<compile_context>
chip_gen: v7x
topology: tpu7x:2x2x1
jax: 0.10.0
libtpu: 0.0.40
codegen_flags: <defaults>
</compile_context>

<pallas_src>
import jax
import jax.numpy as jnp
from jax.experimental import pallas as pl
from jax.experimental.pallas import tpu as pltpu


def _action_embedder_kernel(state_ref, w_aug_ref, aemb_t_ref, out_ref):
    # tmp[B, E+1] = state[B, D] @ W_aug[D, E+1]
    # (last column of W_aug is the bias, so tmp[:, E] = state . b)
    tmp = jnp.dot(state_ref[...], w_aug_ref[...],
                  preferred_element_type=jnp.float32)
    # out tile [B, TA] = tmp[B, E+1] @ A_emb_aug^T[E+1, TA]
    # (last row of the transposed table is ones -> adds the bias term per action)
    out_ref[...] = jnp.dot(tmp, aemb_t_ref[...],
                           preferred_element_type=jnp.float32
                           ).astype(out_ref.dtype)


def action_embedder_forward(state, action_embeddings, weight, bias,
                            *, max_tile_a=512):
    """state: [B, D]; action_embeddings: [A, E]; weight: [D, E] (PyTorch Linear
    layout, D = out_features = action_embedding_dim, E = in_features =
    embedding_dim); bias: [D].

    Returns [B, A] = state @ (action_embeddings @ weight.T + bias).T
    """
    B, D = state.shape
    A, E = action_embeddings.shape
    assert weight.shape == (D, E)
    assert bias.shape == (D,)
    assert max_tile_a % 128 == 0

    f32 = jnp.float32
    state = state.astype(f32)

    # Fold bias into the weight (extra column) and the action table (ones col).
    w_aug = jnp.concatenate(
        [weight.astype(f32), bias.astype(f32).reshape(D, 1)], axis=1)      # [D, E+1]
    aemb_aug_t = jnp.concatenate(
        [action_embeddings.astype(f32), jnp.ones((A, 1), f32)], axis=1).T  # [E+1, A]
    E1 = E + 1

    # Lane-dense output: pad the action axis to a multiple of 128 / of the tile.
    a_pad128 = pl.cdiv(A, 128) * 128
    ta = min(a_pad128, max_tile_a)
    a_pad = pl.cdiv(A, ta) * ta
    if a_pad > A:
        aemb_aug_t = jnp.pad(aemb_aug_t, ((0, 0), (0, a_pad - A)))

    grid = (a_pad // ta,)

    # Explicit VMEM budget (covers v5e's smaller default scoped limit; stays
    # well inside v7x's 64 MiB physical VMEM).
    working_set = 4 * (B * D + D * E1 + 2 * E1 * ta + 2 * B * ta)
    vmem_limit = int(min(max(4 * working_set, 16 * 1024 * 1024),
                         48 * 1024 * 1024))

    out_padded = pl.pallas_call(
        _action_embedder_kernel,
        out_shape=jax.ShapeDtypeStruct((B, a_pad), jnp.float32),
        grid_spec=pltpu.PrefetchScalarGridSpec(
            num_scalar_prefetch=0,
            grid=grid,
            in_specs=[
                pl.BlockSpec((B, D), lambda i: (0, 0)),    # state, resident
                pl.BlockSpec((D, E1), lambda i: (0, 0)),   # W_aug, resident
                pl.BlockSpec((E1, ta), lambda i: (0, i)),  # action-table tile
            ],
            out_specs=pl.BlockSpec((B, ta), lambda i: (0, i)),
        ),
        compiler_params=pltpu.CompilerParams(
            dimension_semantics=("parallel",),   # independent A tiles (2 TCs on v7x)
            vmem_limit_bytes=vmem_limit,
        ),
    )(state, w_aug, aemb_aug_t)

    return out_padded[:, :A]


# TODO(synk): distance_metric=True branch (-torch.cdist(state, proj, p=2)) and
# use_random_matrix=True branch are not implemented; dict / legal-mask
# bookkeeping is host-side Python with no kernel equivalent.
# TODO(synk): for production-scale tables (Roberta, E=768, large A) cast the
# action table / weights to bf16 (keep preferred_element_type=f32) to hit the
# bf16 MXU rate and halve HBM traffic; kept f32 here for exact numeric check.


def _reference(state, action_embeddings, weight, bias):
    proj = action_embeddings @ weight.T + bias
    return state @ proj.T


if __name__ == "__main__":
    key = jax.random.PRNGKey(0)

    # --- Test 1: module-consistent small shapes (single 128-wide tile). ---
    k1, k2, k3, k4 = jax.random.split(key, 4)
    B, A, E, D = 8, 24, 32, 32
    action_embeddings = jax.random.normal(k1, (A, E), dtype=jnp.float32)
    weight = jax.random.normal(k2, (D, E), dtype=jnp.float32) * 0.1   # Linear.weight
    bias = jax.random.normal(k3, (D,), dtype=jnp.float32) * 0.1       # Linear.bias
    state = jax.random.normal(k4, (B, D), dtype=jnp.float32)

    out = action_embedder_forward(state, action_embeddings, weight, bias)
    out = jax.block_until_ready(out)
    ref = _reference(state, action_embeddings, weight, bias)
    assert out.shape == (B, A)
    assert jnp.allclose(out, ref, atol=1e-4, rtol=1e-4)

    # --- Test 2: larger action table exercising the multi-tile grid path. ---
    k5, k6, k7, k8 = jax.random.split(jax.random.PRNGKey(1), 4)
    B2, A2, E2, D2 = 5, 700, 48, 40
    ae2 = jax.random.normal(k5, (A2, E2), dtype=jnp.float32)
    w2 = jax.random.normal(k6, (D2, E2), dtype=jnp.float32) * 0.1
    b2 = jax.random.normal(k7, (D2,), dtype=jnp.float32) * 0.1
    s2 = jax.random.normal(k8, (B2, D2), dtype=jnp.float32)

    out2 = action_embedder_forward(s2, ae2, w2, b2)
    out2 = jax.block_until_ready(out2)
    ref2 = _reference(s2, ae2, w2, b2)
    assert out2.shape == (B2, A2)
    assert jnp.allclose(out2, ref2, atol=1e-3, rtol=1e-3)

    print("KERNEL_OK")
</pallas_src>

<mosaic_0001>
module attributes {stable_mosaic.version = 11 : i64} {
  func.func @_action_embedder_kernel(%arg0: i32, %arg1: memref<8x32xf32, #tpu.memory_space<vmem>>, %arg2: memref<32x33xf32, #tpu.memory_space<vmem>>, %arg3: memref<33x128xf32, #tpu.memory_space<vmem>>, %arg4: memref<8x128xf32, #tpu.memory_space<vmem>>) attributes {dimension_semantics = [#tpu.dimension_semantics<parallel>], iteration_bounds = array<i64: 1>, scalar_prefetch = 0 : i64, scratch_operands = 0 : i64, tpu.core_type = #tpu.core_type<tc>, window_params = [{pipeline_mode = #tpu.pipeline_mode<synchronous>, transform_indices = @transform_0, window_bounds = array<i64: 8, 32>}, {pipeline_mode = #tpu.pipeline_mode<synchronous>, transform_indices = @transform_1, window_bounds = array<i64: 32, 33>}, {transform_indices = @transform_2, window_bounds = array<i64: 33, 128>}, {transform_indices = @transform_3, window_bounds = array<i64: 8, 128>}]} {
    %c0 = arith.constant 0 : index
    %c0_0 = arith.constant 0 : index
    %0 = vector.load %arg1[%c0, %c0_0] : memref<8x32xf32, #tpu.memory_space<vmem>>, vector<8x32xf32>
    %c0_1 = arith.constant 0 : index
    %c0_2 = arith.constant 0 : index
    %1 = vector.load %arg2[%c0_1, %c0_2] : memref<32x33xf32, #tpu.memory_space<vmem>>, vector<32x33xf32>
    %cst = arith.constant dense<0.000000e+00> : vector<8x33xf32>
    %2 = tpu.matmul %0, %1, %cst {dimension_numbers = #tpu.dot_dimension_numbers<[1], [0], [0], [1], [0, 0, 1, 1], [], []>} : vector<8x32xf32>, vector<32x33xf32>, vector<8x33xf32> -> vector<8x33xf32>
    %c0_3 = arith.constant 0 : index
    %c0_4 = arith.constant 0 : index
    %3 = vector.load %arg3[%c0_3, %c0_4] : memref<33x128xf32, #tpu.memory_space<vmem>>, vector<33x128xf32>
    %cst_5 = arith.constant dense<0.000000e+00> : vector<8x128xf32>
    %4 = tpu.matmul %2, %3, %cst_5 {dimension_numbers = #tpu.dot_dimension_numbers<[1], [0], [0], [1], [0, 0, 1, 1], [], []>} : vector<8x33xf32>, vector<33x128xf32>, vector<8x128xf32> -> vector<8x128xf32>
    %c0_6 = arith.constant 0 : index
    %c0_7 = arith.constant 0 : index
    %5 = vector.load %arg4[%c0_6, %c0_7] : memref<8x128xf32, #tpu.memory_space<vmem>>, vector<8x128xf32>
    tpu.vector_store %arg4[%c0_6, %c0_7], %4 {strides = array<i32>} : memref<8x128xf32, #tpu.memory_space<vmem>>, vector<8x128xf32>,
    return
  }
  func.func @transform_0(%arg0: i32) -> (i32, i32) {
    %c0_i32 = arith.constant 0 : i32
    %c0_i32_0 = arith.constant 0 : i32
    %c0_i32_1 = arith.constant 0 : i32
    return %c0_i32, %c0_i32_0 : i32, i32
  }
  func.func @transform_1(%arg0: i32) -> (i32, i32) {
    %c0_i32 = arith.constant 0 : i32
    %c0_i32_0 = arith.constant 0 : i32
    %c0_i32_1 = arith.constant 0 : i32
    return %c0_i32, %c0_i32_0 : i32, i32
  }
  func.func @transform_2(%arg0: i32) -> (i32, i32) {
    %c0_i32 = arith.constant 0 : i32
    %c0_i32_0 = arith.constant 0 : i32
    return %c0_i32, %arg0 : i32, i32
  }
  func.func @transform_3(%arg0: i32) -> (i32, i32) {
    %c0_i32 = arith.constant 0 : i32
    %c0_i32_0 = arith.constant 0 : i32
    return %c0_i32, %arg0 : i32, i32
  }
}

</mosaic_0001>

<llo_original>
// kernel: tpu_custom_call.1
$region0: #{tpu_custom_call.1}
  #allocation0 [shape = 'u32[]', space=smem, size = 0x4, offset = 0x4, fixed_abs, tag = 'smem constant byte address 0x4 - core index']
  #allocation1 [shape = 'u32[144,128]{1,0:T(1,128)}', space=vmem, size = 0x12000, scoped, tag = 'internal scratch']
  %s0 = inlined_call_operand.hbm [shape: f32[8,32], index: 0, kind: input, shape index: {}]
  %s1 = inlined_call_operand.hbm [shape: f32[32,33], index: 1, kind: input, shape index: {}]
  %s2 = inlined_call_operand.hbm [shape: f32[33,128], index: 2, kind: input, shape index: {}]
  %s3 = inlined_call_operand.hbm [shape: f32[8,128], index: 3, kind: output, shape index: {}]
  %s4 = sld [smem:[#allocation0]]
  $region34: #{tpu_custom_call.1} parent=0
    _
  %s6 = ssub.s32 1, %s4
  %s7 = scalar_select 0, %s6, %s4
  $region1: #{tpu_custom_call.1} parent=0
    #allocation2 [shape = 'u8[4096]{0}', space=vmem, size = 0x1000, scoped, tag = 'input window, operand 0, single buffered']
    #allocation3 [shape = 's32[1]{0}', space=sflag, size = 0x4, scoped, tag = 'scoped memory for tpu_custom_call.1']
    #allocation4 [shape = 's32[1]{0}', space=sflag, size = 0x4, scoped, tag = 'scoped memory for tpu_custom_call.1']
    #allocation5 [shape = 'u8[16384]{0}', space=vmem, size = 0x4000, scoped, tag = 'input window, operand 1, single buffered']
    #allocation6 [shape = 's32[1]{0}', space=sflag, size = 0x4, scoped, tag = 'scoped memory for tpu_custom_call.1']
    #allocation7 [shape = 'u8[20480]{0}', space=vmem, size = 0x5000, scoped, tag = 'input window, operand 2, single buffered']
    #allocation8 [shape = 'u8[4096]{0}', space=vmem, size = 0x1000, scoped, tag = 'output window, operand 0, single buffered']
    %8 = vsyncpa [#allocation3], 0
    %9 = vsyncpa [#allocation6], 0
    %10 = vsyncpa [#allocation4], 0
    // Predicated region
    $region2: #{tpu_custom_call.1} parent=1 // pred_check
      _
    $region3: #{tpu_custom_call.1} parent=1 // pred_check_branch
      %12 = sbr.rel (0) target = $region5
    $region4: #{tpu_custom_call.1} parent=1 // pred_region
      %s14 = ssub.s32 128, 128
      %15 = vsyncadd [#allocation3], %s14
      %s17 = sshll.u32 [#allocation2], 4
      %s18 = int_to_ptr.vmem [resolvable:$true] %s17
      %20 = dma.hbm_to_vmem [thread:$0]  %s0, 128, %s18, [#allocation3]
    $region5: #{tpu_custom_call.1} parent=1 // pred_fallthru
      _
    // Predicated region
    $region6: #{tpu_custom_call.1} parent=1 // pred_check
      _
    $region7: #{tpu_custom_call.1} parent=1 // pred_check_branch
      %22 = sbr.rel (0) target = $region9
    $region8: #{tpu_custom_call.1} parent=1 // pred_region
      %s24 = ssub.s32 512, 512
      %25 = vsyncadd [#allocation6], %s24
      %s26 = sshll.u32 [#allocation5], 4
      %s27 = int_to_ptr.vmem [resolvable:$true] %s26
      %32 = dma.hbm_to_vmem [thread:$0]  %s1, 512, %s27, [#allocation6], 128, 128, 8
    $region9: #{tpu_custom_call.1} parent=1 // pred_fallthru
      _
    // Predicated region
    $region10: #{tpu_custom_call.1} parent=1 // pred_check
      _
    $region11: #{tpu_custom_call.1} parent=1 // pred_check_branch
      %34 = sbr.rel (0) target = $region13
    $region12: #{tpu_custom_call.1} parent=1 // pred_region
      %s36 = ssub.s32 640, 640
      %37 = vsyncadd [#allocation6], %s36
      %s38 = sshll.u32 [#allocation7], 4
      %s39 = int_to_ptr.vmem [resolvable:$true] %s38
      %44 = dma.hbm_to_vmem [thread:$0]  %s2, 640, %s39, [#allocation6], 128, 128, 8
    $region13: #{tpu_custom_call.1} parent=1 // pred_fallthru
      _
    // Predicated region
    $region14: #{tpu_custom_call.1} parent=1 // pred_check
      _
    $region15: #{tpu_custom_call.1} parent=1 // pred_check_branch
      %46 = sbr.rel (0) target = $region17
    $region16: #{tpu_custom_call.1} parent=1 // pred_region
      %47 = dma.done [#allocation3], 128
    $region17: #{tpu_custom_call.1} parent=1 // pred_fallthru
      _
    // Predicated region
    $region18: #{tpu_custom_call.1} parent=1 // pred_check
      _
    $region19: #{tpu_custom_call.1} parent=1 // pred_check_branch
      %49 = sbr.rel (0) target = $region21
    $region20: #{tpu_custom_call.1} parent=1 // pred_region
      %50 = dma.done [#allocation6], 512
    $region21: #{tpu_custom_call.1} parent=1 // pred_fallthru
      _
    // Predicated region
    $region22: #{tpu_custom_call.1} parent=1 // pred_check
      _
    $region23: #{tpu_custom_call.1} parent=1 // pred_check_branch
      %52 = sbr.rel (0) target = $region25
    $region24: #{tpu_custom_call.1} parent=1 // pred_region
      %53 = dma.done [#allocation6], 640
    $region25: #{tpu_custom_call.1} parent=1 // pred_fallthru
      _
    %v54 = vld [vmem:[#allocation2] sm:$0xff]
    %v55 = vld [vmem:[#allocation5] sm:$0xff]
    %v56 = vld [vmem:[#allocation5 + $0x8] sm:$0xff]
    %v57 = vld [vmem:[#allocation5 + $0x10] sm:$0xff]
    %v58 = vld [vmem:[#allocation5 + $0x18] sm:$0xff]
    %vm59 = vcmask 261120
    %v61 = vsel %vm59, %v54, 0
    %63 = vmatprep.subr.mxu0 0.0
    %64 = vmatpush1.msra.mxu0 %v55
    %65 = vmatprep.subr.mxu0 0.0
    %66 = vmatpush1.msra.mxu0 %v56
    %67 = vmatprep.subr.mxu0 0.0
    %68 = vmatpush1.msra.mxu0 %v57
    %69 = vmatprep.subr.mxu0 0.0
    %70 = vmatpush1.msra.mxu0 %v58
    %71 = vmatprep.subr.mxu0 0.0
    %72 = vmatpush1.msra.mxu0 0.0
    %73 = vmatprep.subr.mxu0 0.0
    %74 = vmatpush1.msra.mxu0 0.0
    %75 = vmatprep.subr.mxu0 0.0
    %76 = vmatpush1.msra.mxu0 0.0
    %77 = vmatprep.subr.mxu0 0.0
    %78 = vmatpush1.msra.mxu0 0.0
    %79 = vmatprep.subr.mxu0 0.0
    %80 = vmatpush1.msra.mxu0 0.0
    %81 = vmatprep.subr.mxu0 0.0
    %82 = vmatpush1.msra.mxu0 0.0
    %83 = vmatprep.subr.mxu0 0.0
    %84 = vmatpush1.msra.mxu0 0.0
    %85 = vmatprep.subr.mxu0 0.0
    %86 = vmatpush1.msra.mxu0 0.0
    %87 = vmatprep.subr.mxu0 0.0
    %88 = vmatpush1.msra.mxu0 0.0
    %89 = vmatprep.subr.mxu0 0.0
    %90 = vmatpush1.msra.mxu0 0.0
    %91 = vmatprep.subr.mxu0 0.0
    %92 = vmatpush1.msra.mxu0 0.0
    %93 = vmatprep.subr.mxu0 0.0
    %94 = vmatpush1.msra.mxu0 0.0
    %95 = vmatprep.subr.mxu0 0.0
    %96 = vmatpush1.msra.mxu0 0.0
    %97 = vmatprep.subr.mxu0 0.0
    %98 = vmatpush1.msra.mxu0 0.0
    %99 = vmatprep.subr.mxu0 0.0
    %100 = vmatpush1.msra.mxu0 0.0
    %101 = vmatprep.subr.mxu0 0.0
    %102 = vmatpush1.msra.mxu0 0.0
    %103 = vmatprep.subr.mxu0 0.0
    %104 = vmatpush1.msra.mxu0 0.0
    %105 = vmatprep.subr.mxu0 0.0
    %106 = vmatpush1.msra.mxu0 0.0
    %107 = vmatprep.subr.mxu0 0.0
    %108 = vmatpush1.msra.mxu0 0.0
    %109 = vmatprep.subr.mxu0 0.0
    %110 = vmatpush1.msra.mxu0 0.0
    %111 = vmatprep.subr.mxu0 0.0
    %112 = vmatpush1.msra.mxu0 0.0
    %113 = vmatprep.subr.mxu0 0.0
    %114 = vmatpush1.msra.mxu0 0.0
    %115 = vmatprep.subr.mxu0 0.0
    %116 = vmatpush1.msra.mxu0 0.0
    %117 = vmatprep.subr.mxu0 0.0
    %118 = vmatpush1.msra.mxu0 0.0
    %119 = vmatprep.subr.mxu0 0.0
    %120 = vmatpush1.msra.mxu0 0.0
    %121 = vmatprep.subr.mxu0 0.0
    %122 = vmatpush1.msra.mxu0 0.0
    %123 = vmatprep.subr.mxu0 0.0
    %124 = vmatpush1.msra.mxu0 0.0
    %125 = vmatprep.subr.mxu0 0.0
    %126 = vmatpush1.msra.mxu0 0.0
    %127 = vmatprep.mubr.f32.mxu0 0.0
    %128 = vmatmul.mubr.f32.gmra.mrb[0].mxu0 %v61
    %v129 = vpop.f32.mrb[0].mxu0
    %v130 = vadd.f32 0.0, %v129
    %v131 = vpop.f32.mrb[0].mxu0
    %132 = vdwg.mxu0
    %v133 = vld [vmem:[#allocation7] sm:$0xff]
    %v134 = vld [vmem:[#allocation7 + $0x8] sm:$0xff]
    %v135 = vld [vmem:[#allocation7 + $0x10] sm:$0xff]
    %v136 = vld [vmem:[#allocation7 + $0x18] sm:$0xff]
    %v137 = vld [vmem:[#allocation7 + $0x20] sm:$0x1]
    %vm138 = vcmask 269312
    %v140 = vsel %vm138, %v130, 0
    %vm142 = vcmask 1040384
    %v144 = vsel %vm142, %v137, 0
    %146 = vmatprep.subr.mxu0 0.0
    %147 = vmatpush1.msra.mxu0 %v133
    %148 = vmatprep.subr.mxu0 0.0
    %149 = vmatpush1.msra.mxu0 %v134
    %150 = vmatprep.subr.mxu0 0.0
    %151 = vmatpush1.msra.mxu0 %v135
    %152 = vmatprep.subr.mxu0 0.0
    %153 = vmatpush1.msra.mxu0 %v136
    %154 = vmatprep.subr.mxu0 0.0
    %155 = vmatpush1.msra.mxu0 %v144
    %156 = vmatprep.subr.mxu0 0.0
    %157 = vmatpush1.msra.mxu0 0.0
    %158 = vmatprep.subr.mxu0 0.0
    %159 = vmatpush1.msra.mxu0 0.0
    %160 = vmatprep.subr.mxu0 0.0
    %161 = vmatpush1.msra.mxu0 0.0
    %162 = vmatprep.subr.mxu0 0.0
    %163 = vmatpush1.msra.mxu0 0.0
    %164 = vmatprep.subr.mxu0 0.0
    %165 = vmatpush1.msra.mxu0 0.0
    %166 = vmatprep.subr.mxu0 0.0
    %167 = vmatpush1.msra.mxu0 0.0
    %168 = vmatprep.subr.mxu0 0.0
    %169 = vmatpush1.msra.mxu0 0.0
    %170 = vmatprep.subr.mxu0 0.0
    %171 = vmatpush1.msra.mxu0 0.0
    %172 = vmatprep.subr.mxu0 0.0
    %173 = vmatpush1.msra.mxu0 0.0
    %174 = vmatprep.subr.mxu0 0.0
    %175 = vmatpush1.msra.mxu0 0.0
    %176 = vmatprep.subr.mxu0 0.0
    %177 = vmatpush1.msra.mxu0 0.0
    %178 = vmatprep.subr.mxu0 0.0
    %179 = vmatpush1.msra.mxu0 0.0
    %180 = vmatprep.subr.mxu0 0.0
    %181 = vmatpush1.msra.mxu0 0.0
    %182 = vmatprep.subr.mxu0 0.0
    %183 = vmatpush1.msra.mxu0 0.0
    %184 = vmatprep.subr.mxu0 0.0
    %185 = vmatpush1.msra.mxu0 0.0
    %186 = vmatprep.subr.mxu0 0.0
    %187 = vmatpush1.msra.mxu0 0.0
    %188 = vmatprep.subr.mxu0 0.0
    %189 = vmatpush1.msra.mxu0 0.0
    %190 = vmatprep.subr.mxu0 0.0
    %191 = vmatpush1.msra.mxu0 0.0
    %192 = vmatprep.subr.mxu0 0.0
    %193 = vmatpush1.msra.mxu0 0.0
    %194 = vmatprep.subr.mxu0 0.0
    %195 = vmatpush1.msra.mxu0 0.0
    %196 = vmatprep.subr.mxu0 0.0
    %197 = vmatpush1.msra.mxu0 0.0
    %198 = vmatprep.subr.mxu0 0.0
    %199 = vmatpush1.msra.mxu0 0.0
    %200 = vmatprep.subr.mxu0 0.0
    %201 = vmatpush1.msra.mxu0 0.0
    %202 = vmatprep.subr.mxu0 0.0
    %203 = vmatpush1.msra.mxu0 0.0
    %204 = vmatprep.subr.mxu0 0.0
    %205 = vmatpush1.msra.mxu0 0.0
    %206 = vmatprep.subr.mxu0 0.0
    %207 = vmatpush1.msra.mxu0 0.0
    %208 = vmatprep.subr.mxu0 0.0
    %209 = vmatpush1.msra.mxu0 0.0
    %210 = vmatprep.mubr.f32.mxu0 0.0
    %211 = vmatmul.mubr.f32.gmra.mrb[0].mxu0 %v140
    %v212 = vpop.f32.mrb[0].mxu0
    %v213 = vadd.f32 0.0, %v212
    %v214 = vpop.f32.mrb[0].mxu0
    %215 = vdwg.mxu0
    %216 = vst [vmem:[#allocation8] sm:$0xff] %v213
    // Predicated region
    $region26: #{tpu_custom_call.1} parent=1 // pred_check
      _
    $region27: #{tpu_custom_call.1} parent=1 // pred_check_branch
      %218 = sbr.rel (0) target = $region29
    $region28: #{tpu_custom_call.1} parent=1 // pred_region
      %s220 = ssub.s32 128, 128
      %221 = vsyncadd [#allocation4], %s220
      %s223 = sshll.u32 [#allocation8], 4
      %s224 = int_to_ptr.vmem [resolvable:$true] %s223
      %226 = dma.vmem_to_hbm [thread:$0]  %s224, 128, %s3, [#allocation4]
    $region29: #{tpu_custom_call.1} parent=1 // pred_fallthru
      _
    // Predicated region
    $region30: #{tpu_custom_call.1} parent=1 // pred_check
      _
    $region31: #{tpu_custom_call.1} parent=1 // pred_check_branch
      %228 = sbr.rel (0) target = $region33
    $region32: #{tpu_custom_call.1} parent=1 // pred_region
      %229 = dma.done [#allocation4], 128
    $region33: #{tpu_custom_call.1} parent=1 // pred_fallthru
      _
    %230 = vsyncpa [#allocation3], 1
    %231 = vsyncpa [#allocation6], 1
    %232 = vsyncpa [#allocation4], 1

</llo_original>
